<compile_context>
chip_gen: v7x
topology: tpu7x:2x2x1
jax: 0.10.0
libtpu: 0.0.40
codegen_flags: <defaults>
</compile_context>

<pallas_src>
import functools

import jax
import jax.numpy as jnp
from jax.experimental import pallas as pl
from jax.experimental.pallas import tpu as pltpu

# ----------------------------- problem sizes --------------------------------
INPUT_DIM = 32
HIDDEN_DIM = 32
HIDDEN_DIM2 = HIDDEN_DIM // 2            # 16
OUTPUT_DIM = 8
NUM_EXPERTS = 4
TOP_K = 2
BATCH = 16
BN_EPS = 1e-5

E_COLS1 = NUM_EXPERTS * HIDDEN_DIM       # 128 (layer-1 experts concat on out axis)
E_COLS2 = NUM_EXPERTS * HIDDEN_DIM2      # 64  (layer-2 experts concat on out axis)
OUT_LANES = 128                          # lane-dense padded output width

# ------------------------- packed parameter slab -----------------------------
# ONE (104,128) f32 slab, all sub-arrays start on 8-row boundaries:
#   rows  0:32 , cols 0:128 -> W1    layer-1 experts concat  (bn1+bn2 folded)
#   rows 32:64 , cols 0:64  -> W2    layer-2 experts concat
#   rows 32:64 , cols 64:68 -> G2    layer-2 gate (merged matmul with W2)
#   rows 32:64 , cols 68:72 -> G1    layer-1 gate            (bn1 folded)
#   rows 64:80 , cols 0:128 -> OW    output Linear, lane-padded (cols 0:8 used)
#   rows 80:84 , cols 0:128 -> SEL1  prebaked expand selector, layer 1
#   rows 88:92 , cols 0:64  -> SEL2  prebaked expand selector, layer 2
#   row  96    , cols 0:128 -> b1    layer-1 expert biases    (bn folded)
#   row  97    , cols 0:68  -> b2g   layer-2 expert (0:64) + gate (64:68) biases
#   row  98    , cols 0:4   -> g1b   layer-1 gate bias        (bn1 folded)
#   row  99    , cols 0:128 -> ob    output bias, lane-padded
SLAB_SHAPE = (104, 128)


# ----------------------------- kernel helpers -------------------------------
def _topk_softmax(logits):
    """Top-k selection + softmax over the selected logits. logits: (B, E)."""
    b_rows, num_experts = logits.shape
    neg_inf = jnp.float32(-1e30)
    lane_iota = jax.lax.broadcasted_iota(jnp.int32, (b_rows, num_experts), 1)

    # k rounds of (argmax, knock-out); lowest index wins ties (ties across the
    # k-th rank may differ from torch.topk, measure-zero for random floats).
    work = logits
    mask = jnp.zeros(logits.shape, dtype=jnp.bool_)
    for _ in range(TOP_K):
        row_max = jnp.max(work, axis=-1, keepdims=True)
        cand = jnp.where(work == row_max, lane_iota, num_experts)
        chosen = jnp.min(cand, axis=-1, keepdims=True)
        one_hot = lane_iota == chosen
        mask = mask | one_hot
        work = jnp.where(one_hot, neg_inf, work)

    masked = jnp.where(mask, logits, neg_inf)
    masked = masked - jnp.max(masked, axis=-1, keepdims=True)
    expd = jnp.exp(masked) * mask.astype(jnp.float32)
    denom = jnp.sum(expd, axis=-1, keepdims=True)
    return expd / denom                                    # exact; (B, E)


def _combine(weights, y_all, sel, d_out, num_experts):
    """Weighted top-k combine of concatenated expert outputs.

    weights: (B, E) softmax weights (zero for non-selected experts)
    y_all  : (B, E*d_out) all experts' outputs, concatenated along lanes
    sel    : (B-independent) prebaked (E, E*d_out) 0/1 expansion selector
    """
    # expand: one tiny MXU matmul; w_cols[b, e*d_out+d] = weights[b, e]
    w_cols = jnp.dot(weights, sel, preferred_element_type=jnp.float32)
    wy = w_cols * y_all
    # reduce over experts: sum of E static lane slices (no selector matmul)
    out = wy[:, 0:d_out]
    for e in range(1, num_experts):
        out = out + wy[:, e * d_out:(e + 1) * d_out]
    return out                                             # (B, d_out)


# ------------------------------- the kernel ---------------------------------
def moe_network_kernel(x_ref, w_ref, o_ref):
    x = x_ref[...].astype(jnp.float32)                     # (B, 32); bn1 folded

    # static slices straight off the slab ref
    w1 = w_ref[0:32, :]                                    # (32, 128)
    w2g = w_ref[32:64, 0:E_COLS2 + NUM_EXPERTS]            # (32, 68)
    g1 = w_ref[32:64, 68:72]                               # (32, 4)
    ow = w_ref[64:80, :]                                   # (16, 128) lane-padded
    sel1 = w_ref[80:84, :]                                 # (4, 128)
    sel2 = w_ref[88:92, 0:E_COLS2]                         # (4, 64)
    b1 = w_ref[96:97, :]                                   # (1, 128)
    b2g = w_ref[97:98, 0:E_COLS2 + NUM_EXPERTS]            # (1, 68)
    g1b = w_ref[98:99, 0:NUM_EXPERTS]                      # (1, 4)
    ob = w_ref[99:100, :]                                  # (1, 128) lane-padded

    # ---- MoE layer 1 (input_norm + hidden_norm folded into its weights) ----
    y1 = jnp.dot(x, w1, preferred_element_type=jnp.float32) + b1       # (B,128)
    logits1 = jnp.dot(x, g1, preferred_element_type=jnp.float32) + g1b  # (B,4)
    wt1 = _topk_softmax(logits1)
    h = _combine(wt1, y1, sel1, HIDDEN_DIM, NUM_EXPERTS)               # (B,32)
    h = jnp.maximum(h, 0.0)                                            # ReLU

    # Dropout: eval-mode identity.
    # TODO(synk): training-mode dropout would need pltpu.prng_* with a seed arg.

    # ---- MoE layer 2: experts + gate merged into ONE 68-lane matmul --------
    yg2 = jnp.dot(h, w2g, preferred_element_type=jnp.float32) + b2g    # (B,68)
    y2 = yg2[:, 0:E_COLS2]                                             # (B,64)
    logits2 = yg2[:, E_COLS2:E_COLS2 + NUM_EXPERTS]                    # (B,4)
    wt2 = _topk_softmax(logits2)
    h2 = _combine(wt2, y2, sel2, HIDDEN_DIM2, NUM_EXPERTS)             # (B,16)
    h2 = jnp.maximum(h2, 0.0)                                          # ReLU

    # ---- output Linear, lane-dense (B,128) store ----------------------------
    out = jnp.dot(h2, ow, preferred_element_type=jnp.float32) + ob     # (B,128)
    o_ref[...] = out.astype(o_ref.dtype)


# ------------------------------- wrapper -------------------------------------
def moe_network_forward(x, slab):
    batch = x.shape[0]
    padded = pl.pallas_call(
        moe_network_kernel,
        out_shape=jax.ShapeDtypeStruct((batch, OUT_LANES), jnp.float32),
        grid=(1,),
        in_specs=[
            pl.BlockSpec((batch, INPUT_DIM), lambda i: (0, 0)),
            pl.BlockSpec(SLAB_SHAPE, lambda i: (0, 0)),
        ],
        out_specs=pl.BlockSpec((batch, OUT_LANES), lambda i: (0, 0)),
        compiler_params=pltpu.CompilerParams(
            dimension_semantics=("arbitrary",)),
    )(x, slab)
    return padded[:, :OUTPUT_DIM]


# --------------------- host-side param folding / packing ---------------------
def prepare_params(p):
    """Fold both BatchNorms into moe1 and pack everything (weights, biases,
    prebaked expand selectors, lane-padded output layer) into ONE slab."""
    s1 = p["bn1_g"] / jnp.sqrt(p["bn1_v"] + BN_EPS)        # (1, 32)
    t1 = p["bn1_b"] - p["bn1_m"] * s1                      # (1, 32)
    s2 = p["bn2_g"] / jnp.sqrt(p["bn2_v"] + BN_EPS)        # (1, 32)
    t2 = p["bn2_b"] - p["bn2_m"] * s2                      # (1, 32)

    # moe1 gate: (x*s1 + t1) @ Wg + bg == x @ (diag(s1) Wg) + (t1 @ Wg + bg)
    g1w = s1.T * p["g1w"]                                  # (32, 4)
    g1b = t1 @ p["g1w"] + p["g1b"]                         # (1, 4)

    # moe1 experts: fold bn1 (input side) and bn2 (output side).  Exact because
    # the top-k softmax weights sum to 1 (softmax denominator is exact).
    e1w = p["e1w"] * s1[0][None, :, None] * s2[0][None, None, :]           # (E,32,32)
    e1b = (jnp.einsum("i,eio->eo", t1[0], p["e1w"]) + p["e1b"]) * s2 + t2  # (E,32)

    # experts concatenated along the output axis (column e*d_out + d)
    w1_cat = jnp.moveaxis(e1w, 0, 1).reshape(INPUT_DIM, E_COLS1)           # (32,128)
    b1_cat = e1b.reshape(E_COLS1)                                          # (128,)
    w2_cat = jnp.moveaxis(p["e2w"], 0, 1).reshape(HIDDEN_DIM, E_COLS2)     # (32,64)
    b2_cat = p["e2b"].reshape(E_COLS2)                                     # (64,)

    # prebaked 0/1 expansion selectors: sel[e, e*d_out + d] = 1
    sel1 = (jnp.arange(E_COLS1)[None, :] // HIDDEN_DIM
            == jnp.arange(NUM_EXPERTS)[:, None]).astype(jnp.float32)       # (4,128)
    sel2 = (jnp.arange(E_COLS2)[None, :] // HIDDEN_DIM2
            == jnp.arange(NUM_EXPERTS)[:, None]).astype(jnp.float32)       # (4,64)

    slab = jnp.zeros(SLAB_SHAPE, jnp.float32)
    slab = slab.at[0:32, :].set(w1_cat)
    slab = slab.at[32:64, 0:E_COLS2].set(w2_cat)
    slab = slab.at[32:64, E_COLS2:E_COLS2 + NUM_EXPERTS].set(p["g2w"])
    slab = slab.at[32:64, 68:72].set(g1w)
    slab = slab.at[64:80, 0:OUTPUT_DIM].set(p["ow"])
    slab = slab.at[80:84, :].set(sel1)
    slab = slab.at[88:92, 0:E_COLS2].set(sel2)
    slab = slab.at[96, :].set(b1_cat)
    slab = slab.at[97, 0:E_COLS2].set(b2_cat)
    slab = slab.at[97, E_COLS2:E_COLS2 + NUM_EXPERTS].set(p["g2b"][0])
    slab = slab.at[98, 0:NUM_EXPERTS].set(g1b[0])
    slab = slab.at[99, 0:OUTPUT_DIM].set(p["ob"][0])
    return slab


# --------------------------- pure-JAX reference ------------------------------
def _gated_moe_ref(x, gw, gb, ew, eb, k):
    logits = x @ gw + gb                                   # (B, E)
    vals, idx = jax.lax.top_k(logits, k)                   # (B, k)
    w = jax.nn.softmax(vals, axis=-1)                      # (B, k)
    outs = jnp.einsum("bi,eio->beo", x, ew) + eb[None]     # (B, E, D_out)
    sel = jnp.take_along_axis(outs, idx[..., None], axis=1)
    return jnp.sum(w[..., None] * sel, axis=1)


def moe_network_ref(x, p):
    x = (x - p["bn1_m"]) / jnp.sqrt(p["bn1_v"] + BN_EPS) * p["bn1_g"] + p["bn1_b"]
    h = _gated_moe_ref(x, p["g1w"], p["g1b"], p["e1w"], p["e1b"], TOP_K)
    h = (h - p["bn2_m"]) / jnp.sqrt(p["bn2_v"] + BN_EPS) * p["bn2_g"] + p["bn2_b"]
    h = jnp.maximum(h, 0.0)
    h2 = _gated_moe_ref(h, p["g2w"], p["g2b"], p["e2w"], p["e2b"], TOP_K)
    h2 = jnp.maximum(h2, 0.0)
    return h2 @ p["ow"] + p["ob"]


# --------------------------- deterministic init -------------------------------
def init_params(key):
    keys = jax.random.split(key, 20)
    n = functools.partial(jax.random.normal, dtype=jnp.float32)
    u = functools.partial(jax.random.uniform, dtype=jnp.float32)
    hd2 = HIDDEN_DIM // 2
    return {
        # input BatchNorm1d (gamma, beta, running_mean, running_var)
        "bn1_g": 1.0 + 0.1 * n(keys[0], (1, INPUT_DIM)),
        "bn1_b": 0.1 * n(keys[1], (1, INPUT_DIM)),
        "bn1_m": 0.1 * n(keys[2], (1, INPUT_DIM)),
        "bn1_v": u(keys[3], (1, INPUT_DIM), minval=0.5, maxval=1.5),
        # moe1: gate + experts  (input_dim -> hidden_dim)
        "g1w": 0.2 * n(keys[4], (INPUT_DIM, NUM_EXPERTS)),
        "g1b": 0.1 * n(keys[5], (1, NUM_EXPERTS)),
        "e1w": 0.2 * n(keys[6], (NUM_EXPERTS, INPUT_DIM, HIDDEN_DIM)),
        "e1b": 0.1 * n(keys[7], (NUM_EXPERTS, HIDDEN_DIM)),
        # hidden BatchNorm1d
        "bn2_g": 1.0 + 0.1 * n(keys[8], (1, HIDDEN_DIM)),
        "bn2_b": 0.1 * n(keys[9], (1, HIDDEN_DIM)),
        "bn2_m": 0.1 * n(keys[10], (1, HIDDEN_DIM)),
        "bn2_v": u(keys[11], (1, HIDDEN_DIM), minval=0.5, maxval=1.5),
        # moe2: gate + experts  (hidden_dim -> hidden_dim // 2)
        "g2w": 0.2 * n(keys[12], (HIDDEN_DIM, NUM_EXPERTS)),
        "g2b": 0.1 * n(keys[13], (1, NUM_EXPERTS)),
        "e2w": 0.2 * n(keys[14], (NUM_EXPERTS, HIDDEN_DIM, hd2)),
        "e2b": 0.1 * n(keys[15], (NUM_EXPERTS, hd2)),
        # output_layer Linear(hidden_dim//2 -> output_dim), stored (in, out)
        "ow": 0.2 * n(keys[16], (hd2, OUTPUT_DIM)),
        "ob": 0.1 * n(keys[17], (1, OUTPUT_DIM)),
    }


if __name__ == "__main__":
    key = jax.random.PRNGKey(0)
    k_x, k_p = jax.random.split(key)
    x = jax.random.normal(k_x, (BATCH, INPUT_DIM), dtype=jnp.float32)
    params = init_params(k_p)
    slab = prepare_params(params)

    out = jax.block_until_ready(moe_network_forward(x, slab))
    ref = jax.block_until_ready(moe_network_ref(x, params))

    assert out.shape == (BATCH, OUTPUT_DIM), out.shape
    # tolerance covers MXU f32 pass differences and BN-fold reassociation
    if not jnp.allclose(out, ref, rtol=2e-3, atol=2e-3):
        raise AssertionError(
            f"mismatch: max abs err {float(jnp.max(jnp.abs(out - ref)))}")
    print("KERNEL_OK")
</pallas_src>

<mosaic_0001>
module attributes {stable_mosaic.version = 11 : i64} {
  func.func @moe_network_kernel(%arg0: i32, %arg1: memref<16x32xf32, #tpu.memory_space<vmem>>, %arg2: memref<104x128xf32, #tpu.memory_space<vmem>>, %arg3: memref<16x128xf32, #tpu.memory_space<vmem>>) attributes {dimension_semantics = [#tpu.dimension_semantics<arbitrary>], iteration_bounds = array<i64: 1>, scalar_prefetch = 0 : i64, scratch_operands = 0 : i64, tpu.core_type = #tpu.core_type<tc>, window_params = [{pipeline_mode = #tpu.pipeline_mode<synchronous>, transform_indices = @transform_0, window_bounds = array<i64: 16, 32>}, {pipeline_mode = #tpu.pipeline_mode<synchronous>, transform_indices = @transform_1, window_bounds = array<i64: 104, 128>}, {pipeline_mode = #tpu.pipeline_mode<synchronous>, transform_indices = @transform_2, window_bounds = array<i64: 16, 128>}]} {
    %c0 = arith.constant 0 : index
    %c0_0 = arith.constant 0 : index
    %0 = vector.load %arg1[%c0, %c0_0] : memref<16x32xf32, #tpu.memory_space<vmem>>, vector<16x32xf32>
    %c0_1 = arith.constant 0 : index
    %c0_2 = arith.constant 0 : index
    %1 = vector.load %arg2[%c0_1, %c0_2] : memref<104x128xf32, #tpu.memory_space<vmem>>, vector<32x128xf32>
    %c32 = arith.constant 32 : index
    %c0_3 = arith.constant 0 : index
    %2 = vector.load %arg2[%c32, %c0_3] : memref<104x128xf32, #tpu.memory_space<vmem>>, vector<32x68xf32>
    %c32_4 = arith.constant 32 : index
    %c68 = arith.constant 68 : index
    %3 = vector.load %arg2[%c32_4, %c68] : memref<104x128xf32, #tpu.memory_space<vmem>>, vector<32x4xf32>
    %c64 = arith.constant 64 : index
    %c0_5 = arith.constant 0 : index
    %4 = vector.load %arg2[%c64, %c0_5] : memref<104x128xf32, #tpu.memory_space<vmem>>, vector<16x128xf32>
    %c80 = arith.constant 80 : index
    %c0_6 = arith.constant 0 : index
    %5 = vector.load %arg2[%c80, %c0_6] : memref<104x128xf32, #tpu.memory_space<vmem>>, vector<4x128xf32>
    %c88 = arith.constant 88 : index
    %c0_7 = arith.constant 0 : index
    %6 = vector.load %arg2[%c88, %c0_7] : memref<104x128xf32, #tpu.memory_space<vmem>>, vector<4x64xf32>
    %c96 = arith.constant 96 : index
    %c0_8 = arith.constant 0 : index
    %7 = vector.load %arg2[%c96, %c0_8] : memref<104x128xf32, #tpu.memory_space<vmem>>, vector<1x128xf32>
    %c97 = arith.constant 97 : index
    %c0_9 = arith.constant 0 : index
    %8 = vector.load %arg2[%c97, %c0_9] : memref<104x128xf32, #tpu.memory_space<vmem>>, vector<1x68xf32>
    %c98 = arith.constant 98 : index
    %c0_10 = arith.constant 0 : index
    %9 = vector.load %arg2[%c98, %c0_10] : memref<104x128xf32, #tpu.memory_space<vmem>>, vector<1x4xf32>
    %c99 = arith.constant 99 : index
    %c0_11 = arith.constant 0 : index
    %10 = vector.load %arg2[%c99, %c0_11] : memref<104x128xf32, #tpu.memory_space<vmem>>, vector<1x128xf32>
    %cst = arith.constant dense<0.000000e+00> : vector<16x128xf32>
    %11 = tpu.matmul %0, %1, %cst {dimension_numbers = #tpu.dot_dimension_numbers<[1], [0], [0], [1], [0, 0, 1, 1], [], []>} : vector<16x32xf32>, vector<32x128xf32>, vector<16x128xf32> -> vector<16x128xf32>
    %12 = vector.broadcast %7 : vector<1x128xf32> to vector<16x128xf32>
    %13 = arith.addf %11, %12 : vector<16x128xf32>
    %cst_12 = arith.constant dense<0.000000e+00> : vector<16x4xf32>
    %14 = tpu.matmul %0, %3, %cst_12 {dimension_numbers = #tpu.dot_dimension_numbers<[1], [0], [0], [1], [0, 0, 1, 1], [], []>} : vector<16x32xf32>, vector<32x4xf32>, vector<16x4xf32> -> vector<16x4xf32>
    %15 = vector.broadcast %9 : vector<1x4xf32> to vector<16x4xf32>
    %16 = arith.addf %14, %15 : vector<16x4xf32>
    %17 = tpu.iota {dimensions = array<i32: 1>} : vector<16x4xi32>
    %false = arith.constant false
    %18 = vector.broadcast %false : i1 to vector<16x4xi1>
    %cst_13 = arith.constant dense<0xFF800000> : vector<16xf32>
    %19 = vector.multi_reduction <maximumf>, %16, %cst_13 [1] : vector<16x4xf32> to vector<16xf32>
    %20 = vector.shape_cast %19 : vector<16xf32> to vector<16x1xf32>
    %21 = vector.broadcast %20 : vector<16x1xf32> to vector<16x4xf32>
    %22 = arith.cmpf oeq, %16, %21 : vector<16x4xf32>
    %c4_i32 = arith.constant 4 : i32
    %23 = vector.broadcast %c4_i32 : i32 to vector<16x4xi32>
    %24 = arith.select %22, %17, %23 : vector<16x4xi1>, vector<16x4xi32>
    %cst_14 = arith.constant dense<2147483647> : vector<16xi32>
    %25 = vector.multi_reduction <minsi>, %24, %cst_14 [1] : vector<16x4xi32> to vector<16xi32>
    %26 = vector.shape_cast %25 : vector<16xi32> to vector<16x1xi32>
    %27 = vector.broadcast %26 : vector<16x1xi32> to vector<16x4xi32>
    %28 = arith.cmpi eq, %17, %27 : vector<16x4xi32>
    %29 = arith.ori %18, %28 : vector<16x4xi1>
    %cst_15 = arith.constant -1.000000e+30 : f32
    %30 = vector.broadcast %cst_15 : f32 to vector<16x4xf32>
    %31 = arith.select %28, %30, %16 : vector<16x4xi1>, vector<16x4xf32>
    %cst_16 = arith.constant dense<0xFF800000> : vector<16xf32>
    %32 = vector.multi_reduction <maximumf>, %31, %cst_16 [1] : vector<16x4xf32> to vector<16xf32>
    %33 = vector.shape_cast %32 : vector<16xf32> to vector<16x1xf32>
    %34 = vector.broadcast %33 : vector<16x1xf32> to vector<16x4xf32>
    %35 = arith.cmpf oeq, %31, %34 : vector<16x4xf32>
    %c4_i32_17 = arith.constant 4 : i32
    %36 = vector.broadcast %c4_i32_17 : i32 to vector<16x4xi32>
    %37 = arith.select %35, %17, %36 : vector<16x4xi1>, vector<16x4xi32>
    %cst_18 = arith.constant dense<2147483647> : vector<16xi32>
    %38 = vector.multi_reduction <minsi>, %37, %cst_18 [1] : vector<16x4xi32> to vector<16xi32>
    %39 = vector.shape_cast %38 : vector<16xi32> to vector<16x1xi32>
    %40 = vector.broadcast %39 : vector<16x1xi32> to vector<16x4xi32>
    %41 = arith.cmpi eq, %17, %40 : vector<16x4xi32>
    %42 = arith.ori %29, %41 : vector<16x4xi1>
    %cst_19 = arith.constant -1.000000e+30 : f32
    %43 = vector.broadcast %cst_19 : f32 to vector<16x4xf32>
    %44 = arith.select %42, %16, %43 : vector<16x4xi1>, vector<16x4xf32>
    %cst_20 = arith.constant dense<0xFF800000> : vector<16xf32>
    %45 = vector.multi_reduction <maximumf>, %44, %cst_20 [1] : vector<16x4xf32> to vector<16xf32>
    %46 = vector.shape_cast %45 : vector<16xf32> to vector<16x1xf32>
    %47 = vector.broadcast %46 : vector<16x1xf32> to vector<16x4xf32>
    %48 = arith.subf %44, %47 : vector<16x4xf32>
    %49 = math.exp %48 : vector<16x4xf32>
    %50 = arith.extui %42 : vector<16x4xi1> to vector<16x4xi32>
    %51 = arith.sitofp %50 : vector<16x4xi32> to vector<16x4xf32>
    %52 = arith.mulf %49, %51 : vector<16x4xf32>
    %cst_21 = arith.constant dense<0.000000e+00> : vector<16xf32>
    %53 = vector.multi_reduction <add>, %52, %cst_21 [1] : vector<16x4xf32> to vector<16xf32>
    %54 = vector.shape_cast %53 : vector<16xf32> to vector<16x1xf32>
    %55 = vector.broadcast %54 : vector<16x1xf32> to vector<16x4xf32>
    %56 = arith.divf %52, %55 : vector<16x4xf32>
    %cst_22 = arith.constant dense<0.000000e+00> : vector<16x128xf32>
    %57 = tpu.matmul %56, %5, %cst_22 {dimension_numbers = #tpu.dot_dimension_numbers<[1], [0], [0], [1], [0, 0, 1, 1], [], []>} : vector<16x4xf32>, vector<4x128xf32>, vector<16x128xf32> -> vector<16x128xf32>
    %58 = arith.mulf %57, %13 : vector<16x128xf32>
    %59 = vector.extract_strided_slice %58 {offsets = [0, 0], sizes = [16, 32], strides = [1, 1]} : vector<16x128xf32> to vector<16x32xf32>
    %60 = vector.extract_strided_slice %58 {offsets = [0, 32], sizes = [16, 32], strides = [1, 1]} : vector<16x128xf32> to vector<16x32xf32>
    %61 = arith.addf %59, %60 : vector<16x32xf32>
    %62 = vector.extract_strided_slice %58 {offsets = [0, 64], sizes = [16, 32], strides = [1, 1]} : vector<16x128xf32> to vector<16x32xf32>
    %63 = arith.addf %61, %62 : vector<16x32xf32>
    %64 = vector.extract_strided_slice %58 {offsets = [0, 96], sizes = [16, 32], strides = [1, 1]} : vector<16x128xf32> to vector<16x32xf32>
    %65 = arith.addf %63, %64 : vector<16x32xf32>
    %cst_23 = arith.constant 0.000000e+00 : f32
    %66 = vector.broadcast %cst_23 : f32 to vector<16x32xf32>
    %67 = arith.maximumf %65, %66 : vector<16x32xf32>
    %cst_24 = arith.constant dense<0.000000e+00> : vector<16x68xf32>
    %68 = tpu.matmul %67, %2, %cst_24 {dimension_numbers = #tpu.dot_dimension_numbers<[1], [0], [0], [1], [0, 0, 1, 1], [], []>} : vector<16x32xf32>, vector<32x68xf32>, vector<16x68xf32> -> vector<16x68xf32>
    %69 = vector.broadcast %8 : vector<1x68xf32> to vector<16x68xf32>
    %70 = arith.addf %68, %69 : vector<16x68xf32>
    %71 = vector.extract_strided_slice %70 {offsets = [0, 0], sizes = [16, 64], strides = [1, 1]} : vector<16x68xf32> to vector<16x64xf32>
    %72 = vector.extract_strided_slice %70 {offsets = [0, 64], sizes = [16, 4], strides = [1, 1]} : vector<16x68xf32> to vector<16x4xf32>
    %73 = tpu.iota {dimensions = array<i32: 1>} : vector<16x4xi32>
    %false_25 = arith.constant false
    %74 = vector.broadcast %false_25 : i1 to vector<16x4xi1>
    %cst_26 = arith.constant dense<0xFF800000> : vector<16xf32>
    %75 = vector.multi_reduction <maximumf>, %72, %cst_26 [1] : vector<16x4xf32> to vector<16xf32>
    %76 = vector.shape_cast %75 : vector<16xf32> to vector<16x1xf32>
    %77 = vector.broadcast %76 : vector<16x1xf32> to vector<16x4xf32>
    %78 = arith.cmpf oeq, %72, %77 : vector<16x4xf32>
    %c4_i32_27 = arith.constant 4 : i32
    %79 = vector.broadcast %c4_i32_27 : i32 to vector<16x4xi32>
    %80 = arith.select %78, %73, %79 : vector<16x4xi1>, vector<16x4xi32>
    %cst_28 = arith.constant dense<2147483647> : vector<16xi32>
    %81 = vector.multi_reduction <minsi>, %80, %cst_28 [1] : vector<16x4xi32> to vector<16xi32>
    %82 = vector.shape_cast %81 : vector<16xi32> to vector<16x1xi32>
    %83 = vector.broadcast %82 : vector<16x1xi32> to vector<16x4xi32>
    %84 = arith.cmpi eq, %73, %83 : vector<16x4xi32>
    %85 = arith.ori %74, %84 : vector<16x4xi1>
    %cst_29 = arith.constant -1.000000e+30 : f32
    %86 = vector.broadcast %cst_29 : f32 to vector<16x4xf32>
    %87 = arith.select %84, %86, %72 : vector<16x4xi1>, vector<16x4xf32>
    %cst_30 = arith.constant dense<0xFF800000> : vector<16xf32>
    %88 = vector.multi_reduction <maximumf>, %87, %cst_30 [1] : vector<16x4xf32> to vector<16xf32>
    %89 = vector.shape_cast %88 : vector<16xf32> to vector<16x1xf32>
    %90 = vector.broadcast %89 : vector<16x1xf32> to vector<16x4xf32>
    %91 = arith.cmpf oeq, %87, %90 : vector<16x4xf32>
    %c4_i32_31 = arith.constant 4 : i32
    %92 = vector.broadcast %c4_i32_31 : i32 to vector<16x4xi32>
    %93 = arith.select %91, %73, %92 : vector<16x4xi1>, vector<16x4xi32>
    %cst_32 = arith.constant dense<2147483647> : vector<16xi32>
    %94 = vector.multi_reduction <minsi>, %93, %cst_32 [1] : vector<16x4xi32> to vector<16xi32>
    %95 = vector.shape_cast %94 : vector<16xi32> to vector<16x1xi32>
    %96 = vector.broadcast %95 : vector<16x1xi32> to vector<16x4xi32>
    %97 = arith.cmpi eq, %73, %96 : vector<16x4xi32>
    %98 = arith.ori %85, %97 : vector<16x4xi1>
    %cst_33 = arith.constant -1.000000e+30 : f32
    %99 = vector.broadcast %cst_33 : f32 to vector<16x4xf32>
    %100 = arith.select %98, %72, %99 : vector<16x4xi1>, vector<16x4xf32>
    %cst_34 = arith.constant dense<0xFF800000> : vector<16xf32>
    %101 = vector.multi_reduction <maximumf>, %100, %cst_34 [1] : vector<16x4xf32> to vector<16xf32>
    %102 = vector.shape_cast %101 : vector<16xf32> to vector<16x1xf32>
    %103 = vector.broadcast %102 : vector<16x1xf32> to vector<16x4xf32>
    %104 = arith.subf %100, %103 : vector<16x4xf32>
    %105 = math.exp %104 : vector<16x4xf32>
    %106 = arith.extui %98 : vector<16x4xi1> to vector<16x4xi32>
    %107 = arith.sitofp %106 : vector<16x4xi32> to vector<16x4xf32>
    %108 = arith.mulf %105, %107 : vector<16x4xf32>
    %cst_35 = arith.constant dense<0.000000e+00> : vector<16xf32>
    %109 = vector.multi_reduction <add>, %108, %cst_35 [1] : vector<16x4xf32> to vector<16xf32>
    %110 = vector.shape_cast %109 : vector<16xf32> to vector<16x1xf32>
    %111 = vector.broadcast %110 : vector<16x1xf32> to vector<16x4xf32>
    %112 = arith.divf %108, %111 : vector<16x4xf32>
    %cst_36 = arith.constant dense<0.000000e+00> : vector<16x64xf32>
    %113 = tpu.matmul %112, %6, %cst_36 {dimension_numbers = #tpu.dot_dimension_numbers<[1], [0], [0], [1], [0, 0, 1, 1], [], []>} : vector<16x4xf32>, vector<4x64xf32>, vector<16x64xf32> -> vector<16x64xf32>
    %114 = arith.mulf %113, %71 : vector<16x64xf32>
    %115 = vector.extract_strided_slice %114 {offsets = [0, 0], sizes = [16, 16], strides = [1, 1]} : vector<16x64xf32> to vector<16x16xf32>
    %116 = vector.extract_strided_slice %114 {offsets = [0, 16], sizes = [16, 16], strides = [1, 1]} : vector<16x64xf32> to vector<16x16xf32>
    %117 = arith.addf %115, %116 : vector<16x16xf32>
    %118 = vector.extract_strided_slice %114 {offsets = [0, 32], sizes = [16, 16], strides = [1, 1]} : vector<16x64xf32> to vector<16x16xf32>
    %119 = arith.addf %117, %118 : vector<16x16xf32>
    %120 = vector.extract_strided_slice %114 {offsets = [0, 48], sizes = [16, 16], strides = [1, 1]} : vector<16x64xf32> to vector<16x16xf32>
    %121 = arith.addf %119, %120 : vector<16x16xf32>
    %cst_37 = arith.constant 0.000000e+00 : f32
    %122 = vector.broadcast %cst_37 : f32 to vector<16x16xf32>
    %123 = arith.maximumf %121, %122 : vector<16x16xf32>
    %cst_38 = arith.constant dense<0.000000e+00> : vector<16x128xf32>
    %124 = tpu.matmul %123, %4, %cst_38 {dimension_numbers = #tpu.dot_dimension_numbers<[1], [0], [0], [1], [0, 0, 1, 1], [], []>} : vector<16x16xf32>, vector<16x128xf32>, vector<16x128xf32> -> vector<16x128xf32>
    %125 = vector.broadcast %10 : vector<1x128xf32> to vector<16x128xf32>
    %126 = arith.addf %124, %125 : vector<16x128xf32>
    %c0_39 = arith.constant 0 : index
    %c0_40 = arith.constant 0 : index
    %127 = vector.load %arg3[%c0_39, %c0_40] : memref<16x128xf32, #tpu.memory_space<vmem>>, vector<16x128xf32>
    tpu.vector_store %arg3[%c0_39, %c0_40], %126 {strides = array<i32>} : memref<16x128xf32, #tpu.memory_space<vmem>>, vector<16x128xf32>,
    return
  }
  func.func @transform_0(%arg0: i32) -> (i32, i32) {
    %c0_i32 = arith.constant 0 : i32
    %c0_i32_0 = arith.constant 0 : i32
    %c0_i32_1 = arith.constant 0 : i32
    return %c0_i32, %c0_i32_0 : i32, i32
  }
  func.func @transform_1(%arg0: i32) -> (i32, i32) {
    %c0_i32 = arith.constant 0 : i32
    %c0_i32_0 = arith.constant 0 : i32
    %c0_i32_1 = arith.constant 0 : i32
    return %c0_i32, %c0_i32_0 : i32, i32
  }
  func.func @transform_2(%arg0: i32) -> (i32, i32) {
    %c0_i32 = arith.constant 0 : i32
    %c0_i32_0 = arith.constant 0 : i32
    %c0_i32_1 = arith.constant 0 : i32
    return %c0_i32, %c0_i32_0 : i32, i32
  }
}

</mosaic_0001>

<llo_original>
// kernel: tpu_custom_call.1
$region0: #{tpu_custom_call.1}
  #allocation0 [shape = 'u32[]', space=smem, size = 0x4, offset = 0x4, fixed_abs, tag = 'smem constant byte address 0x4 - core index']
  #allocation1 [shape = 'u32[144,128]{1,0:T(1,128)}', space=vmem, size = 0x12000, scoped, tag = 'internal scratch']
  %s0 = inlined_call_operand.hbm [shape: f32[16,32], index: 0, kind: input, shape index: {}]
  %s1 = inlined_call_operand.hbm [shape: f32[104,128], index: 1, kind: input, shape index: {}]
  %s2 = inlined_call_operand.hbm [shape: f32[16,128], index: 2, kind: output, shape index: {}]
  %s3 = sld [smem:[#allocation0]]
  $region26: #{tpu_custom_call.1} parent=0
    _
  %s5 = ssub.s32 1, %s3
  %s6 = scalar_select 0, %s5, %s3
  $region1: #{tpu_custom_call.1} parent=0
    #allocation2 [shape = 'u8[8192]{0}', space=vmem, size = 0x2000, scoped, tag = 'input window, operand 0, single buffered']
    #allocation3 [shape = 's32[1]{0}', space=sflag, size = 0x4, scoped, tag = 'scoped memory for tpu_custom_call.1']
    #allocation4 [shape = 's32[1]{0}', space=sflag, size = 0x4, scoped, tag = 'scoped memory for tpu_custom_call.1']
    #allocation5 [shape = 'u8[53248]{0}', space=vmem, size = 0xd000, scoped, tag = 'input window, operand 1, single buffered']
    #allocation6 [shape = 's32[1]{0}', space=sflag, size = 0x4, scoped, tag = 'scoped memory for tpu_custom_call.1']
    #allocation7 [shape = 'u8[8192]{0}', space=vmem, size = 0x2000, scoped, tag = 'output window, operand 0, single buffered']
    %7 = vsyncpa [#allocation3], 0
    %8 = vsyncpa [#allocation6], 0
    %9 = vsyncpa [#allocation4], 0
    // Predicated region
    $region2: #{tpu_custom_call.1} parent=1 // pred_check
      _
    $region3: #{tpu_custom_call.1} parent=1 // pred_check_branch
      %11 = sbr.rel (0) target = $region5
    $region4: #{tpu_custom_call.1} parent=1 // pred_region
      %s13 = ssub.s32 256, 256
      %14 = vsyncadd [#allocation3], %s13
      %s15 = sshll.u32 [#allocation2], 4
      %s16 = int_to_ptr.vmem [resolvable:$true] %s15
      %21 = dma.hbm_to_vmem [thread:$0]  %s0, 256, %s16, [#allocation3], 128, 128, 8
    $region5: #{tpu_custom_call.1} parent=1 // pred_fallthru
      _
    // Predicated region
    $region6: #{tpu_custom_call.1} parent=1 // pred_check
      _
    $region7: #{tpu_custom_call.1} parent=1 // pred_check_branch
      %23 = sbr.rel (0) target = $region9
    $region8: #{tpu_custom_call.1} parent=1 // pred_region
      %s25 = ssub.s32 1664, 1664
      %26 = vsyncadd [#allocation6], %s25
      %s27 = sshll.u32 [#allocation5], 4
      %s28 = int_to_ptr.vmem [resolvable:$true] %s27
      %33 = dma.hbm_to_vmem [thread:$0]  %s1, 1664, %s28, [#allocation6], 128, 128, 8
    $region9: #{tpu_custom_call.1} parent=1 // pred_fallthru
      _
    // Predicated region
    $region10: #{tpu_custom_call.1} parent=1 // pred_check
      _
    $region11: #{tpu_custom_call.1} parent=1 // pred_check_branch
      %35 = sbr.rel (0) target = $region13
    $region12: #{tpu_custom_call.1} parent=1 // pred_region
      %36 = dma.done [#allocation3], 256
    $region13: #{tpu_custom_call.1} parent=1 // pred_fallthru
      _
    // Predicated region
    $region14: #{tpu_custom_call.1} parent=1 // pred_check
      _
    $region15: #{tpu_custom_call.1} parent=1 // pred_check_branch
      %38 = sbr.rel (0) target = $region17
    $region16: #{tpu_custom_call.1} parent=1 // pred_region
      %39 = dma.done [#allocation6], 1664
    $region17: #{tpu_custom_call.1} parent=1 // pred_fallthru
      _
    %v40 = vld [vmem:[#allocation2] sm:$0xff]
    %v41 = vld [vmem:[#allocation2 + $0x8] sm:$0xff]
    %v42 = vld [vmem:[#allocation5] sm:$0xff]
    %v43 = vld [vmem:[#allocation5 + $0x8] sm:$0xff]
    %v44 = vld [vmem:[#allocation5 + $0x10] sm:$0xff]
    %v45 = vld [vmem:[#allocation5 + $0x18] sm:$0xff]
    %v46 = vld [vmem:[#allocation5 + $0x20] sm:$0xff]
    %v47 = vld [vmem:[#allocation5 + $0x28] sm:$0xff]
    %v48 = vld [vmem:[#allocation5 + $0x30] sm:$0xff]
    %v49 = vld [vmem:[#allocation5 + $0x38] sm:$0xff]
    %v50 = vld [vmem:[#allocation5 + $0x40] sm:$0xff]
    %v51 = vld [vmem:[#allocation5 + $0x48] sm:$0xff]
    %v52 = vld [vmem:[#allocation5 + $0x50] sm:$0xf]
    %v53 = vld [vmem:[#allocation5 + $0x58] sm:$0xf]
    %v54 = vld [vmem:[#allocation5 + $0x60] sm:$0x1]
    %v55 = vld [vmem:[#allocation5 + $0x61] sm:$0x1]
    %v56 = vld [vmem:[#allocation5 + $0x62] sm:$0x1]
    %v57 = vld [vmem:[#allocation5 + $0x63] sm:$0x1]
    %v58 = vlaneseq
    %v59 = vshrl.u32 %v58, 7
    %v60 = vsub.s32 0, %v59
    %v61 = vrot.slane %v54, %v60
    %vm62 = vcmask 261120
    %v64 = vsel %vm62, %v40, 0
    %v67 = vsel %vm62, %v41, 0
    %69 = vmatprep.subr.mxu0 0.0
    %70 = vmatpush1.msra.mxu0 %v42
    %71 = vmatprep.subr.mxu0 0.0
    %72 = vmatpush1.msra.mxu0 %v43
    %73 = vmatprep.subr.mxu0 0.0
    %74 = vmatpush1.msra.mxu0 %v44
    %75 = vmatprep.subr.mxu0 0.0
    %76 = vmatpush1.msra.mxu0 %v45
    %77 = vmatprep.subr.mxu0 0.0
    %78 = vmatpush1.msra.mxu0 0.0
    %79 = vmatprep.subr.mxu0 0.0
    %80 = vmatpush1.msra.mxu0 0.0
    %81 = vmatprep.subr.mxu0 0.0
    %82 = vmatpush1.msra.mxu0 0.0
    %83 = vmatprep.subr.mxu0 0.0
    %84 = vmatpush1.msra.mxu0 0.0
    %85 = vmatprep.subr.mxu0 0.0
    %86 = vmatpush1.msra.mxu0 0.0
    %87 = vmatprep.subr.mxu0 0.0
    %88 = vmatpush1.msra.mxu0 0.0
    %89 = vmatprep.subr.mxu0 0.0
    %90 = vmatpush1.msra.mxu0 0.0
    %91 = vmatprep.subr.mxu0 0.0
    %92 = vmatpush1.msra.mxu0 0.0
    %93 = vmatprep.subr.mxu0 0.0
    %94 = vmatpush1.msra.mxu0 0.0
    %95 = vmatprep.subr.mxu0 0.0
    %96 = vmatpush1.msra.mxu0 0.0
    %97 = vmatprep.subr.mxu0 0.0
    %98 = vmatpush1.msra.mxu0 0.0
    %99 = vmatprep.subr.mxu0 0.0
    %100 = vmatpush1.msra.mxu0 0.0
    %101 = vmatprep.subr.mxu0 0.0
    %102 = vmatpush1.msra.mxu0 0.0
    %103 = vmatprep.subr.mxu0 0.0
    %104 = vmatpush1.msra.mxu0 0.0
    %105 = vmatprep.subr.mxu0 0.0
    %106 = vmatpush1.msra.mxu0 0.0
    %107 = vmatprep.subr.mxu0 0.0
    %108 = vmatpush1.msra.mxu0 0.0
    %109 = vmatprep.subr.mxu0 0.0
    %110 = vmatpush1.msra.mxu0 0.0
    %111 = vmatprep.subr.mxu0 0.0
    %112 = vmatpush1.msra.mxu0 0.0
    %113 = vmatprep.subr.mxu0 0.0
    %114 = vmatpush1.msra.mxu0 0.0
    %115 = vmatprep.subr.mxu0 0.0
    %116 = vmatpush1.msra.mxu0 0.0
    %117 = vmatprep.subr.mxu0 0.0
    %118 = vmatpush1.msra.mxu0 0.0
    %119 = vmatprep.subr.mxu0 0.0
    %120 = vmatpush1.msra.mxu0 0.0
    %121 = vmatprep.subr.mxu0 0.0
    %122 = vmatpush1.msra.mxu0 0.0
    %123 = vmatprep.subr.mxu0 0.0
    %124 = vmatpush1.msra.mxu0 0.0
    %125 = vmatprep.subr.mxu0 0.0
    %126 = vmatpush1.msra.mxu0 0.0
    %127 = vmatprep.subr.mxu0 0.0
    %128 = vmatpush1.msra.mxu0 0.0
    %129 = vmatprep.subr.mxu0 0.0
    %130 = vmatpush1.msra.mxu0 0.0
    %131 = vmatprep.subr.mxu0 0.0
    %132 = vmatpush1.msra.mxu0 0.0
    %133 = vmatprep.mubr.f32.mxu0 0.0
    %134 = vmatmul.mubr.f32.gmra.mrb[0].mxu0 %v64
    %v135 = vpop.f32.mrb[0].mxu0
    %v136 = vadd.f32 %v61, %v135
    %v137 = vpop.f32.mrb[0].mxu0
    %138 = vmatprep.mubr.f32.mxu0 0.0
    %139 = vmatmul.mubr.f32.gmra.mrb[0].mxu0 %v67
    %v140 = vpop.f32.mrb[0].mxu0
    %v141 = vadd.f32 %v61, %v140
    %v142 = vpop.f32.mrb[0].mxu0
    %143 = vdwg.mxu0
    %v144 = vlaneseq
    %v145 = vshrl.u32 %v144, 7
    %v146 = vsub.s32 0, %v145
    %v147 = vrot.slane %v56, %v146
    %152 = vrot.lane.b32.xlu0 %v46, 60
    %v153 = vpop.permute.xlu0 %152
    %154 = vrot.lane.b32.xlu0 %v47, 60
    %v155 = vpop.permute.xlu0 %154
    %156 = vrot.lane.b32.xlu0 %v48, 60
    %v157 = vpop.permute.xlu0 %156
    %158 = vrot.lane.b32.xlu0 %v49, 60
    %v159 = vpop.permute.xlu0 %158
    %164 = vmatprep.subr.mxu0 0.0
    %165 = vmatpush1.msra.mxu0 %v153
    %166 = vmatprep.subr.mxu0 0.0
    %167 = vmatpush1.msra.mxu0 %v155
    %168 = vmatprep.subr.mxu0 0.0
    %169 = vmatpush1.msra.mxu0 %v157
    %170 = vmatprep.subr.mxu0 0.0
    %171 = vmatpush1.msra.mxu0 %v159
    %172 = vmatprep.subr.mxu0 0.0
    %173 = vmatpush1.msra.mxu0 0.0
    %174 = vmatprep.subr.mxu0 0.0
    %175 = vmatpush1.msra.mxu0 0.0
    %176 = vmatprep.subr.mxu0 0.0
    %177 = vmatpush1.msra.mxu0 0.0
    %178 = vmatprep.subr.mxu0 0.0
    %179 = vmatpush1.msra.mxu0 0.0
    %180 = vmatprep.subr.mxu0 0.0
    %181 = vmatpush1.msra.mxu0 0.0
    %182 = vmatprep.subr.mxu0 0.0
    %183 = vmatpush1.msra.mxu0 0.0
    %184 = vmatprep.subr.mxu0 0.0
    %185 = vmatpush1.msra.mxu0 0.0
    %186 = vmatprep.subr.mxu0 0.0
    %187 = vmatpush1.msra.mxu0 0.0
    %188 = vmatprep.subr.mxu0 0.0
    %189 = vmatpush1.msra.mxu0 0.0
    %190 = vmatprep.subr.mxu0 0.0
    %191 = vmatpush1.msra.mxu0 0.0
    %192 = vmatprep.subr.mxu0 0.0
    %193 = vmatpush1.msra.mxu0 0.0
    %194 = vmatprep.subr.mxu0 0.0
    %195 = vmatpush1.msra.mxu0 0.0
    %196 = vmatprep.subr.mxu0 0.0
    %197 = vmatpush1.msra.mxu0 0.0
    %198 = vmatprep.subr.mxu0 0.0
    %199 = vmatpush1.msra.mxu0 0.0
    %200 = vmatprep.subr.mxu0 0.0
    %201 = vmatpush1.msra.mxu0 0.0
    %202 = vmatprep.subr.mxu0 0.0
    %203 = vmatpush1.msra.mxu0 0.0
    %204 = vmatprep.subr.mxu0 0.0
    %205 = vmatpush1.msra.mxu0 0.0
    %206 = vmatprep.subr.mxu0 0.0
    %207 = vmatpush1.msra.mxu0 0.0
    %208 = vmatprep.subr.mxu0 0.0
    %209 = vmatpush1.msra.mxu0 0.0
    %210 = vmatprep.subr.mxu0 0.0
    %211 = vmatpush1.msra.mxu0 0.0
    %212 = vmatprep.subr.mxu0 0.0
    %213 = vmatpush1.msra.mxu0 0.0
    %214 = vmatprep.subr.mxu0 0.0
    %215 = vmatpush1.msra.mxu0 0.0
    %216 = vmatprep.subr.mxu0 0.0
    %217 = vmatpush1.msra.mxu0 0.0
    %218 = vmatprep.subr.mxu0 0.0
    %219 = vmatpush1.msra.mxu0 0.0
    %220 = vmatprep.subr.mxu0 0.0
    %221 = vmatpush1.msra.mxu0 0.0
    %222 = vmatprep.subr.mxu0 0.0
    %223 = vmatpush1.msra.mxu0 0.0
    %224 = vmatprep.subr.mxu0 0.0
    %225 = vmatpush1.msra.mxu0 0.0
    %226 = vmatprep.subr.mxu0 0.0
    %227 = vmatpush1.msra.mxu0 0.0
    %228 = vmatprep.mubr.f32.mxu0 0.0
    %229 = vmatmul.mubr.f32.gmra.mrb[0].mxu0 %v64
    %v230 = vpop.f32.mrb[0].mxu0
    %v231 = vadd.f32 %v147, %v230
    %v232 = vpop.f32.mrb[0].mxu0
    %233 = vmatprep.mubr.f32.mxu0 0.0
    %234 = vmatmul.mubr.f32.gmra.mrb[0].mxu0 %v67
    %v235 = vpop.f32.mrb[0].mxu0
    %v236 = vadd.f32 %v147, %v235
    %v237 = vpop.f32.mrb[0].mxu0
    %238 = vdwg.mxu0
    %v239 = vlaneseq
    %v240 = vand.u32 %v239, 127
    %vm241 = vcmask 31744
    %v242 = vsel %vm241, %v231, -inf
    %243 = vmax.xlane.f32.xlu0 %v242
    %v244 = vpop.xlane.xlu0 %243
    %v245 = vsel %vm241, %v236, -inf
    %246 = vmax.xlane.f32.xlu0 %v245
    %v247 = vpop.xlane.xlu0 %246
    %vm248 = vcmp.eq.f32.partialorder %v231, %v244
    %vm249 = vcmp.eq.f32.partialorder %v236, %v247
    %v250 = vsel %vm248, %v240, 4
    %v251 = vsel %vm249, %v240, 4
    %v252 = vsel %vm241, %v250, 2147483647
    %v253 = vand.u32 %v252, 65535
    %v254 = vshra.s32 %v252, 16
    %v255 = vcvt.s32.f32 %v253
    %v256 = vcvt.s32.f32 %v254
    %257 = vmin.xlane.f32.xlu0 %v256
    %v258 = vpop.xlane.xlu0 %257
    %vm259 = vcmp.eq.f32.partialorder %v256, %v258
    %v260 = vsel %vm259, %v255, inf
    %261 = vmin.xlane.f32.xlu0 %v260
    %v262 = vpop.xlane.xlu0 %261
    %v263 = vcvt.f32.s32 %v262
    %v264 = vcvt.f32.s32 %v258
    %v265 = vshll.u32 %v264, 16
    %v266 = vadd.s32 %v265, %v263
    %v267 = vsel %vm241, %v251, 2147483647
    %v268 = vand.u32 %v267, 65535
    %v269 = vshra.s32 %v267, 16
    %v270 = vcvt.s32.f32 %v268
    %v271 = vcvt.s32.f32 %v269
    %272 = vmin.xlane.f32.xlu0 %v271
    %v273 = vpop.xlane.xlu0 %272
    %vm274 = vcmp.eq.f32.partialorder %v271, %v273
    %v275 = vsel %vm274, %v270, inf
    %276 = vmin.xlane.f32.xlu0 %v275
    %v277 = vpop.xlane.xlu0 %276
    %v278 = vcvt.f32.s32 %v277
    %v279 = vcvt.f32.s32 %v273
    %v280 = vshll.u32 %v279, 16
    %v281 = vadd.s32 %v280, %v278
    %vm282 = vcmp.eq.s32.totalorder %v240, %v266
    %vm283 = vcmp.eq.s32.totalorder %v240, %v281
    %v284 = vsel %vm282, -1e+30, %v231
    %v285 = vsel %vm283, -1e+30, %v236
    %v286 = vsel %vm241, %v284, -inf
    %287 = vmax.xlane.f32.xlu0 %v286
    %v288 = vpop.xlane.xlu0 %287
    %v289 = vsel %vm241, %v285, -inf
    %290 = vmax.xlane.f32.xlu0 %v289
    %v291 = vpop.xlane.xlu0 %290
    %vm292 = vcmp.eq.f32.partialorder %v284, %v288
    %vm293 = vcmp.eq.f32.partialorder %v285, %v291
    %v294 = vsel %vm292, %v240, 4
    %v295 = vsel %vm293, %v240, 4
    %v296 = vsel %vm241, %v294, 2147483647
    %v297 = vand.u32 %v296, 65535
    %v298 = vshra.s32 %v296, 16
    %v299 = vcvt.s32.f32 %v297
    %v300 = vcvt.s32.f32 %v298
    %301 = vmin.xlane.f32.xlu0 %v300
    %v302 = vpop.xlane.xlu0 %301
    %vm303 = vcmp.eq.f32.partialorder %v300, %v302
    %v304 = vsel %vm303, %v299, inf
    %305 = vmin.xlane.f32.xlu0 %v304
    %v306 = vpop.xlane.xlu0 %305
    %v307 = vcvt.f32.s32 %v306
    %v308 = vcvt.f32.s32 %v302
    %v309 = vshll.u32 %v308, 16
    %v310 = vadd.s32 %v309, %v307
    %v311 = vsel %vm241, %v295, 2147483647
    %v312 = vand.u32 %v311, 65535
    %v313 = vshra.s32 %v311, 16
    %v314 = vcvt.s32.f32 %v312
    %v315 = vcvt.s32.f32 %v313
    %316 = vmin.xlane.f32.xlu0 %v315
    %v317 = vpop.xlane.xlu0 %316
    %vm318 = vcmp.eq.f32.partialorder %v315, %v317
    %v319 = vsel %vm318, %v314, inf
    %320 = vmin.xlane.f32.xlu0 %v319
    %v321 = vpop.xlane.xlu0 %320
    %v322 = vcvt.f32.s32 %v321
    %v323 = vcvt.f32.s32 %v317
    %v324 = vshll.u32 %v323, 16
    %v325 = vadd.s32 %v324, %v322
    %vm326 = vcmp.eq.s32.totalorder %v240, %v310
    %vm327 = vcmp.eq.s32.totalorder %v240, %v325
    %vm328 = vmor %vm282, %vm326
    %vm329 = vmor %vm283, %vm327
    %v330 = vsel %vm328, %v231, -1e+30
    %v331 = vsel %vm329, %v236, -1e+30
    %v332 = vsel %vm241, %v330, -inf
    %333 = vmax.xlane.f32.xlu0 %v332
    %v334 = vpop.xlane.xlu0 %333
    %v335 = vsel %vm241, %v331, -inf
    %336 = vmax.xlane.f32.xlu0 %v335
    %v337 = vpop.xlane.xlu0 %336
    %v338 = vsub.f32 %v330, %v334
    %v339 = vsub.f32 %v331, %v337
    %v340 = vmul.f32 %v338, 1.442695
    %v341 = vpow.pop %v340
    %v342 = vmul.f32 %v339, 1.442695
    %v343 = vpow.pop %v342
    %v344 = vsel %vm328, 1, 0
    %v345 = vsel %vm329, 1, 0
    %v346 = vcvt.s32.f32 %v344
    %v347 = vcvt.s32.f32 %v345
    %v348 = vmul.f32 %v341, %v346
    %v349 = vmul.f32 %v343, %v347
    %v350 = vsel %vm241, %v348, 0.0
    %351 = vadd.xlane.f32.xlu0 %v350
    %v352 = vpop.xlane.xlu0 %351
    %v353 = vsel %vm241, %v349, 0.0
    %354 = vadd.xlane.f32.xlu0 %v353
    %v355 = vpop.xlane.xlu0 %354
    %v356 = vrcp.pop %v352
    %v357 = vmul.f32 %v348, %v356
    %v358 = vrcp.pop %v355
    %v359 = vmul.f32 %v349, %v358
    %v361 = vsel %vm241, %v357, 0
    %v364 = vsel %vm241, %v359, 0
    %vm366 = vcmask 1043456
    %v368 = vsel %vm366, %v52, 0
    %370 = vmatprep.subr.mxu0 0.0
    %371 = vmatpush1.msra.mxu0 %v368
    %372 = vmatprep.subr.mxu0 0.0
    %373 = vmatpush1.msra.mxu0 0.0
    %374 = vmatprep.subr.mxu0 0.0
    %375 = vmatpush1.msra.mxu0 0.0
    %376 = vmatprep.subr.mxu0 0.0
    %377 = vmatpush1.msra.mxu0 0.0
    %378 = vmatprep.subr.mxu0 0.0
    %379 = vmatpush1.msra.mxu0 0.0
    %380 = vmatprep.subr.mxu0 0.0
    %381 = vmatpush1.msra.mxu0 0.0
    %382 = vmatprep.subr.mxu0 0.0
    %383 = vmatpush1.msra.mxu0 0.0
    %384 = vmatprep.subr.mxu0 0.0
    %385 = vmatpush1.msra.mxu0 0.0
    %386 = vmatprep.subr.mxu0 0.0
    %387 = vmatpush1.msra.mxu0 0.0
    %388 = vmatprep.subr.mxu0 0.0
    %389 = vmatpush1.msra.mxu0 0.0
    %390 = vmatprep.subr.mxu0 0.0
    %391 = vmatpush1.msra.mxu0 0.0
    %392 = vmatprep.subr.mxu0 0.0
    %393 = vmatpush1.msra.mxu0 0.0
    %394 = vmatprep.subr.mxu0 0.0
    %395 = vmatpush1.msra.mxu0 0.0
    %396 = vmatprep.subr.mxu0 0.0
    %397 = vmatpush1.msra.mxu0 0.0
    %398 = vmatprep.subr.mxu0 0.0
    %399 = vmatpush1.msra.mxu0 0.0
    %400 = vmatprep.subr.mxu0 0.0
    %401 = vmatpush1.msra.mxu0 0.0
    %402 = vmatprep.subr.mxu0 0.0
    %403 = vmatpush1.msra.mxu0 0.0
    %404 = vmatprep.subr.mxu0 0.0
    %405 = vmatpush1.msra.mxu0 0.0
    %406 = vmatprep.subr.mxu0 0.0
    %407 = vmatpush1.msra.mxu0 0.0
    %408 = vmatprep.subr.mxu0 0.0
    %409 = vmatpush1.msra.mxu0 0.0
    %410 = vmatprep.subr.mxu0 0.0
    %411 = vmatpush1.msra.mxu0 0.0
    %412 = vmatprep.subr.mxu0 0.0
    %413 = vmatpush1.msra.mxu0 0.0
    %414 = vmatprep.subr.mxu0 0.0
    %415 = vmatpush1.msra.mxu0 0.0
    %416 = vmatprep.subr.mxu0 0.0
    %417 = vmatpush1.msra.mxu0 0.0
    %418 = vmatprep.subr.mxu0 0.0
    %419 = vmatpush1.msra.mxu0 0.0
    %420 = vmatprep.subr.mxu0 0.0
    %421 = vmatpush1.msra.mxu0 0.0
    %422 = vmatprep.subr.mxu0 0.0
    %423 = vmatpush1.msra.mxu0 0.0
    %424 = vmatprep.subr.mxu0 0.0
    %425 = vmatpush1.msra.mxu0 0.0
    %426 = vmatprep.subr.mxu0 0.0
    %427 = vmatpush1.msra.mxu0 0.0
    %428 = vmatprep.subr.mxu0 0.0
    %429 = vmatpush1.msra.mxu0 0.0
    %430 = vmatprep.subr.mxu0 0.0
    %431 = vmatpush1.msra.mxu0 0.0
    %432 = vmatprep.subr.mxu0 0.0
    %433 = vmatpush1.msra.mxu0 0.0
    %434 = vmatprep.mubr.f32.mxu0 0.0
    %435 = vmatmul.mubr.f32.gmra.mrb[0].mxu0 %v361
    %v436 = vpop.f32.mrb[0].mxu0
    %v437 = vadd.f32 0.0, %v436
    %v438 = vpop.f32.mrb[0].mxu0
    %439 = vmatprep.mubr.f32.mxu0 0.0
    %440 = vmatmul.mubr.f32.gmra.mrb[0].mxu0 %v364
    %v441 = vpop.f32.mrb[0].mxu0
    %v442 = vadd.f32 0.0, %v441
    %v443 = vpop.f32.mrb[0].mxu0
    %444 = vdwg.mxu0
    %v445 = vmul.f32 %v437, %v136
    %v446 = vmul.f32 %v442, %v141
    %449 = vrot.lane.b32.xlu0 %v445, 96
    %v450 = vpop.permute.xlu0 %449
    %451 = vrot.lane.b32.xlu0 %v446, 96
    %v452 = vpop.permute.xlu0 %451
    %v455 = vadd.f32 %v445, %v450
    %v456 = vadd.f32 %v446, %v452
    %457 = vrot.lane.b32.xlu0 %v445, 64
    %v458 = vpop.permute.xlu0 %457
    %459 = vrot.lane.b32.xlu0 %v446, 64
    %v460 = vpop.permute.xlu0 %459
    %v463 = vadd.f32 %v455, %v458
    %v464 = vadd.f32 %v456, %v460
    %465 = vrot.lane.b32.xlu0 %v445, 32
    %v466 = vpop.permute.xlu0 %465
    %467 = vrot.lane.b32.xlu0 %v446, 32
    %v468 = vpop.permute.xlu0 %467
    %v471 = vadd.f32 %v463, %v466
    %v472 = vadd.f32 %v464, %v468
    %v473 = vmax.f32 %v471, 0.0
    %v474 = vmax.f32 %v472, 0.0
    %v475 = vlaneseq
    %v476 = vshrl.u32 %v475, 7
    %v477 = vsub.s32 0, %v476
    %v478 = vrot.slane %v55, %v477
    %v480 = vsel %vm62, %v473, 0
    %v483 = vsel %vm62, %v474, 0
    %485 = vmatprep.subr.mxu0 0.0
    %486 = vmatpush1.msra.mxu0 %v46
    %487 = vmatprep.subr.mxu0 0.0
    %488 = vmatpush1.msra.mxu0 %v47
    %489 = vmatprep.subr.mxu0 0.0
    %490 = vmatpush1.msra.mxu0 %v48
    %491 = vmatprep.subr.mxu0 0.0
    %492 = vmatpush1.msra.mxu0 %v49
    %493 = vmatprep.subr.mxu0 0.0
    %494 = vmatpush1.msra.mxu0 0.0
    %495 = vmatprep.subr.mxu0 0.0
    %496 = vmatpush1.msra.mxu0 0.0
    %497 = vmatprep.subr.mxu0 0.0
    %498 = vmatpush1.msra.mxu0 0.0
    %499 = vmatprep.subr.mxu0 0.0
    %500 = vmatpush1.msra.mxu0 0.0
    %501 = vmatprep.subr.mxu0 0.0
    %502 = vmatpush1.msra.mxu0 0.0
    %503 = vmatprep.subr.mxu0 0.0
    %504 = vmatpush1.msra.mxu0 0.0
    %505 = vmatprep.subr.mxu0 0.0
    %506 = vmatpush1.msra.mxu0 0.0
    %507 = vmatprep.subr.mxu0 0.0
    %508 = vmatpush1.msra.mxu0 0.0
    %509 = vmatprep.subr.mxu0 0.0
    %510 = vmatpush1.msra.mxu0 0.0
    %511 = vmatprep.subr.mxu0 0.0
    %512 = vmatpush1.msra.mxu0 0.0
    %513 = vmatprep.subr.mxu0 0.0
    %514 = vmatpush1.msra.mxu0 0.0
    %515 = vmatprep.subr.mxu0 0.0
    %516 = vmatpush1.msra.mxu0 0.0
    %517 = vmatprep.subr.mxu0 0.0
    %518 = vmatpush1.msra.mxu0 0.0
    %519 = vmatprep.subr.mxu0 0.0
    %520 = vmatpush1.msra.mxu0 0.0
    %521 = vmatprep.subr.mxu0 0.0
    %522 = vmatpush1.msra.mxu0 0.0
    %523 = vmatprep.subr.mxu0 0.0
    %524 = vmatpush1.msra.mxu0 0.0
    %525 = vmatprep.subr.mxu0 0.0
    %526 = vmatpush1.msra.mxu0 0.0
    %527 = vmatprep.subr.mxu0 0.0
    %528 = vmatpush1.msra.mxu0 0.0
    %529 = vmatprep.subr.mxu0 0.0
    %530 = vmatpush1.msra.mxu0 0.0
    %531 = vmatprep.subr.mxu0 0.0
    %532 = vmatpush1.msra.mxu0 0.0
    %533 = vmatprep.subr.mxu0 0.0
    %534 = vmatpush1.msra.mxu0 0.0
    %535 = vmatprep.subr.mxu0 0.0
    %536 = vmatpush1.msra.mxu0 0.0
    %537 = vmatprep.subr.mxu0 0.0
    %538 = vmatpush1.msra.mxu0 0.0
    %539 = vmatprep.subr.mxu0 0.0
    %540 = vmatpush1.msra.mxu0 0.0
    %541 = vmatprep.subr.mxu0 0.0
    %542 = vmatpush1.msra.mxu0 0.0
    %543 = vmatprep.subr.mxu0 0.0
    %544 = vmatpush1.msra.mxu0 0.0
    %545 = vmatprep.subr.mxu0 0.0
    %546 = vmatpush1.msra.mxu0 0.0
    %547 = vmatprep.subr.mxu0 0.0
    %548 = vmatpush1.msra.mxu0 0.0
    %549 = vmatprep.mubr.f32.mxu0 0.0
    %550 = vmatmul.mubr.f32.gmra.mrb[0].mxu0 %v480
    %v551 = vpop.f32.mrb[0].mxu0
    %v552 = vadd.f32 %v478, %v551
    %v553 = vpop.f32.mrb[0].mxu0
    %554 = vmatprep.mubr.f32.mxu0 0.0
    %555 = vmatmul.mubr.f32.gmra.mrb[0].mxu0 %v483
    %v556 = vpop.f32.mrb[0].mxu0
    %v557 = vadd.f32 %v478, %v556
    %v558 = vpop.f32.mrb[0].mxu0
    %559 = vdwg.mxu0
    %vm560 = vcmask 556544
    %v561 = vsel %vm560, %v552, -inf
    %562 = vmax.xlane.f32.xlu0 %v561
    %v563 = vpop.xlane.xlu0 %562
    %v564 = vsel %vm560, %v557, -inf
    %565 = vmax.xlane.f32.xlu0 %v564
    %v566 = vpop.xlane.xlu0 %565
    %vm567 = vcmp.eq.f32.partialorder %v552, %v563
    %vm568 = vcmp.eq.f32.partialorder %v557, %v566
    %569 = vrot.lane.b32.xlu0 %v240, 64
    %v570 = vpop.permute.xlu0 %569
    %v571 = vsel %vm567, %v570, 4
    %v572 = vsel %vm568, %v570, 4
    %v573 = vsel %vm560, %v571, 2147483647
    %v574 = vand.u32 %v573, 65535
    %v575 = vshra.s32 %v573, 16
    %v576 = vcvt.s32.f32 %v574
    %v577 = vcvt.s32.f32 %v575
    %578 = vmin.xlane.f32.xlu0 %v577
    %v579 = vpop.xlane.xlu0 %578
    %vm580 = vcmp.eq.f32.partialorder %v577, %v579
    %v581 = vsel %vm580, %v576, inf
    %582 = vmin.xlane.f32.xlu0 %v581
    %v583 = vpop.xlane.xlu0 %582
    %v584 = vcvt.f32.s32 %v583
    %v585 = vcvt.f32.s32 %v579
    %v586 = vshll.u32 %v585, 16
    %v587 = vadd.s32 %v586, %v584
    %v588 = vsel %vm560, %v572, 2147483647
    %v589 = vand.u32 %v588, 65535
    %v590 = vshra.s32 %v588, 16
    %v591 = vcvt.s32.f32 %v589
    %v592 = vcvt.s32.f32 %v590
    %593 = vmin.xlane.f32.xlu0 %v592
    %v594 = vpop.xlane.xlu0 %593
    %vm595 = vcmp.eq.f32.partialorder %v592, %v594
    %v596 = vsel %vm595, %v591, inf
    %597 = vmin.xlane.f32.xlu0 %v596
    %v598 = vpop.xlane.xlu0 %597
    %v599 = vcvt.f32.s32 %v598
    %v600 = vcvt.f32.s32 %v594
    %v601 = vshll.u32 %v600, 16
    %v602 = vadd.s32 %v601, %v599
    %vm603 = vcmp.eq.s32.totalorder %v240, %v587
    %vm604 = vcmp.eq.s32.totalorder %v240, %v602
    %607 = vrot.lane.b32.xlu0 %v552, 64
    %v608 = vpop.permute.xlu0 %607
    %609 = vrot.lane.b32.xlu0 %v557, 64
    %v610 = vpop.permute.xlu0 %609
    %v613 = vsel %vm603, -1e+30, %v608
    %v614 = vsel %vm604, -1e+30, %v610
    %v615 = vsel %vm241, %v613, -inf
    %616 = vmax.xlane.f32.xlu0 %v615
    %v617 = vpop.xlane.xlu0 %616
    %v618 = vsel %vm241, %v614, -inf
    %619 = vmax.xlane.f32.xlu0 %v618
    %v620 = vpop.xlane.xlu0 %619
    %vm621 = vcmp.eq.f32.partialorder %v613, %v617
    %vm622 = vcmp.eq.f32.partialorder %v614, %v620
    %v623 = vsel %vm621, %v240, 4
    %v624 = vsel %vm622, %v240, 4
    %v625 = vsel %vm241, %v623, 2147483647
    %v626 = vand.u32 %v625, 65535
    %v627 = vshra.s32 %v625, 16
    %v628 = vcvt.s32.f32 %v626
    %v629 = vcvt.s32.f32 %v627
    %630 = vmin.xlane.f32.xlu0 %v629
    %v631 = vpop.xlane.xlu0 %630
    %vm632 = vcmp.eq.f32.partialorder %v629, %v631
    %v633 = vsel %vm632, %v628, inf
    %634 = vmin.xlane.f32.xlu0 %v633
    %v635 = vpop.xlane.xlu0 %634
    %v636 = vcvt.f32.s32 %v635
    %v637 = vcvt.f32.s32 %v631
    %v638 = vshll.u32 %v637, 16
    %v639 = vadd.s32 %v638, %v636
    %v640 = vsel %vm241, %v624, 2147483647
    %v641 = vand.u32 %v640, 65535
    %v642 = vshra.s32 %v640, 16
    %v643 = vcvt.s32.f32 %v641
    %v644 = vcvt.s32.f32 %v642
    %645 = vmin.xlane.f32.xlu0 %v644
    %v646 = vpop.xlane.xlu0 %645
    %vm647 = vcmp.eq.f32.partialorder %v644, %v646
    %v648 = vsel %vm647, %v643, inf
    %649 = vmin.xlane.f32.xlu0 %v648
    %v650 = vpop.xlane.xlu0 %649
    %v651 = vcvt.f32.s32 %v650
    %v652 = vcvt.f32.s32 %v646
    %v653 = vshll.u32 %v652, 16
    %v654 = vadd.s32 %v653, %v651
    %vm655 = vcmp.eq.s32.totalorder %v240, %v639
    %vm656 = vcmp.eq.s32.totalorder %v240, %v654
    %vm657 = vmor %vm603, %vm655
    %vm658 = vmor %vm604, %vm656
    %v659 = vsel %vm657, %v608, -1e+30
    %v660 = vsel %vm658, %v610, -1e+30
    %v661 = vsel %vm241, %v659, -inf
    %662 = vmax.xlane.f32.xlu0 %v661
    %v663 = vpop.xlane.xlu0 %662
    %v664 = vsel %vm241, %v660, -inf
    %665 = vmax.xlane.f32.xlu0 %v664
    %v666 = vpop.xlane.xlu0 %665
    %v667 = vsub.f32 %v659, %v663
    %v668 = vsub.f32 %v660, %v666
    %v669 = vmul.f32 %v667, 1.442695
    %v670 = vpow.pop %v669
    %v671 = vmul.f32 %v668, 1.442695
    %v672 = vpow.pop %v671
    %v673 = vsel %vm657, 1, 0
    %v674 = vsel %vm658, 1, 0
    %v675 = vcvt.s32.f32 %v673
    %v676 = vcvt.s32.f32 %v674
    %v677 = vmul.f32 %v670, %v675
    %v678 = vmul.f32 %v672, %v676
    %v679 = vsel %vm241, %v677, 0.0
    %680 = vadd.xlane.f32.xlu0 %v679
    %v681 = vpop.xlane.xlu0 %680
    %v682 = vsel %vm241, %v678, 0.0
    %683 = vadd.xlane.f32.xlu0 %v682
    %v684 = vpop.xlane.xlu0 %683
    %v685 = vrcp.pop %v681
    %v686 = vmul.f32 %v677, %v685
    %v687 = vrcp.pop %v684
    %v688 = vmul.f32 %v678, %v687
    %v690 = vsel %vm241, %v686, 0
    %v693 = vsel %vm241, %v688, 0
    %v696 = vsel %vm366, %v53, 0
    %698 = vmatprep.subr.mxu0 0.0
    %699 = vmatpush1.msra.mxu0 %v696
    %700 = vmatprep.subr.mxu0 0.0
    %701 = vmatpush1.msra.mxu0 0.0
    %702 = vmatprep.subr.mxu0 0.0
    %703 = vmatpush1.msra.mxu0 0.0
    %704 = vmatprep.subr.mxu0 0.0
    %705 = vmatpush1.msra.mxu0 0.0
    %706 = vmatprep.subr.mxu0 0.0
    %707 = vmatpush1.msra.mxu0 0.0
    %708 = vmatprep.subr.mxu0 0.0
    %709 = vmatpush1.msra.mxu0 0.0
    %710 = vmatprep.subr.mxu0 0.0
    %711 = vmatpush1.msra.mxu0 0.0
    %712 = vmatprep.subr.mxu0 0.0
    %713 = vmatpush1.msra.mxu0 0.0
    %714 = vmatprep.subr.mxu0 0.0
    %715 = vmatpush1.msra.mxu0 0.0
    %716 = vmatprep.subr.mxu0 0.0
    %717 = vmatpush1.msra.mxu0 0.0
    %718 = vmatprep.subr.mxu0 0.0
    %719 = vmatpush1.msra.mxu0 0.0
    %720 = vmatprep.subr.mxu0 0.0
    %721 = vmatpush1.msra.mxu0 0.0
    %722 = vmatprep.subr.mxu0 0.0
    %723 = vmatpush1.msra.mxu0 0.0
    %724 = vmatprep.subr.mxu0 0.0
    %725 = vmatpush1.msra.mxu0 0.0
    %726 = vmatprep.subr.mxu0 0.0
    %727 = vmatpush1.msra.mxu0 0.0
    %728 = vmatprep.subr.mxu0 0.0
    %729 = vmatpush1.msra.mxu0 0.0
    %730 = vmatprep.subr.mxu0 0.0
    %731 = vmatpush1.msra.mxu0 0.0
    %732 = vmatprep.subr.mxu0 0.0
    %733 = vmatpush1.msra.mxu0 0.0
    %734 = vmatprep.subr.mxu0 0.0
    %735 = vmatpush1.msra.mxu0 0.0
    %736 = vmatprep.subr.mxu0 0.0
    %737 = vmatpush1.msra.mxu0 0.0
    %738 = vmatprep.subr.mxu0 0.0
    %739 = vmatpush1.msra.mxu0 0.0
    %740 = vmatprep.subr.mxu0 0.0
    %741 = vmatpush1.msra.mxu0 0.0
    %742 = vmatprep.subr.mxu0 0.0
    %743 = vmatpush1.msra.mxu0 0.0
    %744 = vmatprep.subr.mxu0 0.0
    %745 = vmatpush1.msra.mxu0 0.0
    %746 = vmatprep.subr.mxu0 0.0
    %747 = vmatpush1.msra.mxu0 0.0
    %748 = vmatprep.subr.mxu0 0.0
    %749 = vmatpush1.msra.mxu0 0.0
    %750 = vmatprep.subr.mxu0 0.0
    %751 = vmatpush1.msra.mxu0 0.0
    %752 = vmatprep.subr.mxu0 0.0
    %753 = vmatpush1.msra.mxu0 0.0
    %754 = vmatprep.subr.mxu0 0.0
    %755 = vmatpush1.msra.mxu0 0.0
    %756 = vmatprep.subr.mxu0 0.0
    %757 = vmatpush1.msra.mxu0 0.0
    %758 = vmatprep.subr.mxu0 0.0
    %759 = vmatpush1.msra.mxu0 0.0
    %760 = vmatprep.subr.mxu0 0.0
    %761 = vmatpush1.msra.mxu0 0.0
    %762 = vmatprep.mubr.f32.mxu0 0.0
    %763 = vmatmul.mubr.f32.gmra.mrb[0].mxu0 %v690
    %v764 = vpop.f32.mrb[0].mxu0
    %v765 = vadd.f32 0.0, %v764
    %v766 = vpop.f32.mrb[0].mxu0
    %767 = vmatprep.mubr.f32.mxu0 0.0
    %768 = vmatmul.mubr.f32.gmra.mrb[0].mxu0 %v693
    %v769 = vpop.f32.mrb[0].mxu0
    %v770 = vadd.f32 0.0, %v769
    %v771 = vpop.f32.mrb[0].mxu0
    %772 = vdwg.mxu0
    %v773 = vmul.f32 %v765, %v552
    %v774 = vmul.f32 %v770, %v557
    %777 = vrot.lane.b32.xlu0 %v773, 112
    %v778 = vpop.permute.xlu0 %777
    %779 = vrot.lane.b32.xlu0 %v774, 112
    %v780 = vpop.permute.xlu0 %779
    %v783 = vadd.f32 %v773, %v778
    %v784 = vadd.f32 %v774, %v780
    %785 = vrot.lane.b32.xlu0 %v773, 96
    %v786 = vpop.permute.xlu0 %785
    %787 = vrot.lane.b32.xlu0 %v774, 96
    %v788 = vpop.permute.xlu0 %787
    %v791 = vadd.f32 %v783, %v786
    %v792 = vadd.f32 %v784, %v788
    %793 = vrot.lane.b32.xlu0 %v773, 80
    %v794 = vpop.permute.xlu0 %793
    %795 = vrot.lane.b32.xlu0 %v774, 80
    %v796 = vpop.permute.xlu0 %795
    %v799 = vadd.f32 %v791, %v794
    %v800 = vadd.f32 %v792, %v796
    %v801 = vmax.f32 %v799, 0.0
    %v802 = vmax.f32 %v800, 0.0
    %v803 = vlaneseq
    %v804 = vshrl.u32 %v803, 7
    %v805 = vsub.s32 0, %v804
    %v806 = vrot.slane %v57, %v805
    %vm807 = vcmask 130048
    %v809 = vsel %vm807, %v801, 0
    %v812 = vsel %vm807, %v802, 0
    %814 = vmatprep.subr.mxu0 0.0
    %815 = vmatpush1.msra.mxu0 %v50
    %816 = vmatprep.subr.mxu0 0.0
    %817 = vmatpush1.msra.mxu0 %v51
    %818 = vmatprep.subr.mxu0 0.0
    %819 = vmatpush1.msra.mxu0 0.0
    %820 = vmatprep.subr.mxu0 0.0
    %821 = vmatpush1.msra.mxu0 0.0
    %822 = vmatprep.subr.mxu0 0.0
    %823 = vmatpush1.msra.mxu0 0.0
    %824 = vmatprep.subr.mxu0 0.0
    %825 = vmatpush1.msra.mxu0 0.0
    %826 = vmatprep.subr.mxu0 0.0
    %827 = vmatpush1.msra.mxu0 0.0
    %828 = vmatprep.subr.mxu0 0.0
    %829 = vmatpush1.msra.mxu0 0.0
    %830 = vmatprep.subr.mxu0 0.0
    %831 = vmatpush1.msra.mxu0 0.0
    %832 = vmatprep.subr.mxu0 0.0
    %833 = vmatpush1.msra.mxu0 0.0
    %834 = vmatprep.subr.mxu0 0.0
    %835 = vmatpush1.msra.mxu0 0.0
    %836 = vmatprep.subr.mxu0 0.0
    %837 = vmatpush1.msra.mxu0 0.0
    %838 = vmatprep.subr.mxu0 0.0
    %839 = vmatpush1.msra.mxu0 0.0
    %840 = vmatprep.subr.mxu0 0.0
    %841 = vmatpush1.msra.mxu0 0.0
    %842 = vmatprep.subr.mxu0 0.0
    %843 = vmatpush1.msra.mxu0 0.0
    %844 = vmatprep.subr.mxu0 0.0
    %845 = vmatpush1.msra.mxu0 0.0
    %846 = vmatprep.subr.mxu0 0.0
    %847 = vmatpush1.msra.mxu0 0.0
    %848 = vmatprep.subr.mxu0 0.0
    %849 = vmatpush1.msra.mxu0 0.0
    %850 = vmatprep.subr.mxu0 0.0
    %851 = vmatpush1.msra.mxu0 0.0
    %852 = vmatprep.subr.mxu0 0.0
    %853 = vmatpush1.msra.mxu0 0.0
    %854 = vmatprep.subr.mxu0 0.0
    %855 = vmatpush1.msra.mxu0 0.0
    %856 = vmatprep.subr.mxu0 0.0
    %857 = vmatpush1.msra.mxu0 0.0
    %858 = vmatprep.subr.mxu0 0.0
    %859 = vmatpush1.msra.mxu0 0.0
    %860 = vmatprep.subr.mxu0 0.0
    %861 = vmatpush1.msra.mxu0 0.0
    %862 = vmatprep.subr.mxu0 0.0
    %863 = vmatpush1.msra.mxu0 0.0
    %864 = vmatprep.subr.mxu0 0.0
    %865 = vmatpush1.msra.mxu0 0.0
    %866 = vmatprep.subr.mxu0 0.0
    %867 = vmatpush1.msra.mxu0 0.0
    %868 = vmatprep.subr.mxu0 0.0
    %869 = vmatpush1.msra.mxu0 0.0
    %870 = vmatprep.subr.mxu0 0.0
    %871 = vmatpush1.msra.mxu0 0.0
    %872 = vmatprep.subr.mxu0 0.0
    %873 = vmatpush1.msra.mxu0 0.0
    %874 = vmatprep.subr.mxu0 0.0
    %875 = vmatpush1.msra.mxu0 0.0
    %876 = vmatprep.subr.mxu0 0.0
    %877 = vmatpush1.msra.mxu0 0.0
    %878 = vmatprep.mubr.f32.mxu0 0.0
    %879 = vmatmul.mubr.f32.gmra.mrb[0].mxu0 %v809
    %v880 = vpop.f32.mrb[0].mxu0
    %v881 = vadd.f32 %v806, %v880
    %v882 = vpop.f32.mrb[0].mxu0
    %883 = vmatprep.mubr.f32.mxu0 0.0
    %884 = vmatmul.mubr.f32.gmra.mrb[0].mxu0 %v812
    %v885 = vpop.f32.mrb[0].mxu0
    %v886 = vadd.f32 %v806, %v885
    %v887 = vpop.f32.mrb[0].mxu0
    %888 = vdwg.mxu0
    %889 = vst [vmem:[#allocation7] sm:$0xff] %v881
    %890 = vst [vmem:[#allocation7 + $0x8] sm:$0xff] %v886
    // Predicated region
    $region18: #{tpu_custom_call.1} parent=1 // pred_check
      _
    $region19: #{tpu_custom_call.1} parent=1 // pred_check_branch
      %892 = sbr.rel (0) target = $region21
    $region20: #{tpu_custom_call.1} parent=1 // pred_region
      %s894 = ssub.s32 256, 256
      %895 = vsyncadd [#allocation4], %s894
      %s896 = sshll.u32 [#allocation7], 4
      %s897 = int_to_ptr.vmem [resolvable:$true] %s896
      %902 = dma.vmem_to_hbm [thread:$0]  %s897, 256, %s2, [#allocation4], 128, 128, 8
    $region21: #{tpu_custom_call.1} parent=1 // pred_fallthru
      _
    // Predicated region
    $region22: #{tpu_custom_call.1} parent=1 // pred_check
      _
    $region23: #{tpu_custom_call.1} parent=1 // pred_check_branch
      %904 = sbr.rel (0) target = $region25
    $region24: #{tpu_custom_call.1} parent=1 // pred_region
      %905 = dma.done [#allocation4], 256
    $region25: #{tpu_custom_call.1} parent=1 // pred_fallthru
      _
    %906 = vsyncpa [#allocation3], 1
    %907 = vsyncpa [#allocation6], 1
    %908 = vsyncpa [#allocation4], 1

</llo_original>
